<compile_context>
chip_gen: v7x
topology: tpu7x:2x2x1
jax: 0.10.0
libtpu: 0.0.40
codegen_flags: <defaults>
</compile_context>

<pallas_src>
import jax
import jax.numpy as jnp
import numpy as np
from jax.experimental import pallas as pl
from jax.experimental.pallas import tpu as pltpu

# ---------------- problem sizes (small, consistent with the module) ----------------
N_NODES = 16          # nodes per graph
IN_FEATS = 32         # in_feats
OUT_FEATS = 32        # out_feats per head
NUM_HEADS = 4         # num_heads -> flattened output width HD = 128 (one lane row)
NEG_SLOPE = 0.2       # leaky relu alpha
HD = NUM_HEADS * OUT_FEATS        # 128
NH = N_NODES * NUM_HEADS          # 64  (lane-packed edge axis: lane = u*H + h)
F_AUG = IN_FEATS + 1              # 33  (constant-1 column carries the bias)
W_TOT = 2 * HD + 2 * NH           # 384 = [fc | res+bias | el-packed | er-packed]
BATCH = 8                         # graphs per pallas_call (grid axis)


# --------------------------------- Pallas kernel -----------------------------------
def gat_layer_kernel(feat_ref, adjp_ref, wcat_ref, diag_ref, rrep_ref, hmt_ref,
                     out_ref):
    """One grid step == one graph.  All refs are small VMEM tiles.

    feat_ref : (N, F_AUG)    node features with a trailing ones column
    adjp_ref : (N, NH)       adjacency lane-packed: adjp[v, u*H+h] = adj[v, u]
    wcat_ref : (F_AUG, 384)  [w | res_w (+bias row) | w@attn_l packed | w@attn_r packed]
    diag_ref : (N, NH)       diag[v, u*H+h] = 1 iff v == u          (el gather)
    rrep_ref : (NH, N)       rrep[u*H+h, u'] = 1 iff u == u'        (row repeat)
    hmt_ref  : (NH, HD)      hmt[u*H+h, j] = 1 iff j // D == h      (head indicator)
    out_ref  : (N, HD)       flattened multi-head output for this graph
    """
    # ---- one fused projection: fc, residual(+bias), el, er all at once ----
    proj = jnp.dot(feat_ref[...], wcat_ref[...],
                   preferred_element_type=jnp.float32)          # (N, 384)
    feat_proj = proj[:, :HD]                                    # (N, 128)
    res_b = proj[:, HD:2 * HD]                                  # (N, 128) res + bias
    el_exp = proj[:, 2 * HD:2 * HD + NH]                        # (N, 64) el[v,h] tiled
    er_full = proj[:, 2 * HD + NH:]                             # (N, 64) er[v,h] tiled

    # el packed as a row: el_row[0, u*H+h] = el[u, h]  (diagonal select + sublane sum)
    el_row = jnp.sum(el_exp * diag_ref[...], axis=0, keepdims=True)   # (1, 64)

    # ---- lane-packed masked edge scores: s[v, u*H+h] = leakyrelu(el[u,h]+er[v,h]) ----
    adjp = adjp_ref[...]                                        # (N, 64)
    s = er_full + el_row
    s = jnp.where(s >= 0.0, s, NEG_SLOPE * s)
    s = jnp.where(adjp > 0.0, s, jnp.float32(-1e30))

    # Global per-row max is a valid softmax shift (per-head result is unchanged).
    m = jnp.max(s, axis=1, keepdims=True)                       # (N, 1)
    p = jnp.exp(s - m) * adjp                                   # exact zeros off-graph

    hmt = hmt_ref[...]                                          # (64, 128)

    # per-head softmax denominator, already broadcast to head columns (MXU)
    d = jnp.dot(p, hmt, preferred_element_type=jnp.float32)     # (N, 128)
    d = jnp.maximum(d, jnp.float32(1e-30))                      # guard (self-loops exist)
    r = pl.reciprocal(d, approx=True)                           # EUP vrcp
    r = r * (2.0 - d * r)                                       # one Newton step

    # ---- aggregation: block-structured (16,64)x(64,128) matmul ----
    # f_stack[u*H+h, :] = feat_proj[u, :] * head_mask[h, :]
    f_stack = jnp.dot(rrep_ref[...], feat_proj,
                      preferred_element_type=jnp.float32) * hmt  # (64, 128)
    agg = jnp.dot(p, f_stack, preferred_element_type=jnp.float32)  # (N, 128)

    # ---- single lane-dense (16, 128) store ----
    out_ref[...] = res_b + agg * r


def gat_layer_forward(feat_aug, adj_packed, w_cat, diag_sel, r_rep, hmask_tiled):
    """Batched wrapper: grid over graphs, whole-array constants, parallel axis."""
    b = feat_aug.shape[0]
    return pl.pallas_call(
        gat_layer_kernel,
        out_shape=jax.ShapeDtypeStruct((b, N_NODES, HD), jnp.float32),
        grid=(b,),
        in_specs=[
            pl.BlockSpec((None, N_NODES, F_AUG), lambda i: (i, 0, 0)),   # per-graph
            pl.BlockSpec((None, N_NODES, NH), lambda i: (i, 0, 0)),      # per-graph
            pl.BlockSpec((F_AUG, W_TOT), lambda i: (0, 0)),              # shared
            pl.BlockSpec((N_NODES, NH), lambda i: (0, 0)),               # shared
            pl.BlockSpec((NH, N_NODES), lambda i: (0, 0)),               # shared
            pl.BlockSpec((NH, HD), lambda i: (0, 0)),                    # shared
        ],
        out_specs=pl.BlockSpec((None, N_NODES, HD), lambda i: (i, 0, 0)),
        compiler_params=pltpu.CompilerParams(dimension_semantics=("parallel",)),
    )(feat_aug, adj_packed, w_cat, diag_sel, r_rep, hmask_tiled)


# ------------------------------ pure-JAX reference ---------------------------------
def gat_layer_ref(feat, adj, w, attn_l, attn_r, res_w, bias):
    feat_proj = (feat @ w).reshape(N_NODES, NUM_HEADS, OUT_FEATS)      # (N, H, D)
    el = jnp.sum(feat_proj * attn_l[None], axis=-1)                    # (N, H)
    er = jnp.sum(feat_proj * attn_r[None], axis=-1)                    # (N, H)
    e = er[:, None, :] + el[None, :, :]                                # (Ndst, Nsrc, H)
    e = jnp.where(e >= 0.0, e, NEG_SLOPE * e)
    mask = adj[:, :, None] > 0.0
    e = jnp.where(mask, e, -1e30)
    e = e - jnp.max(e, axis=1, keepdims=True)
    p = jnp.exp(e) * adj[:, :, None]
    a = p / jnp.sum(p, axis=1, keepdims=True)                          # (Ndst, Nsrc, H)
    rst = jnp.einsum('vuh,uhd->vhd', a, feat_proj)                     # (N, H, D)
    rst = rst + (feat @ res_w).reshape(N_NODES, NUM_HEADS, OUT_FEATS)
    rst = rst + bias.reshape(1, NUM_HEADS, OUT_FEATS)
    return rst.reshape(N_NODES, HD)                                    # flatten(1)


# ------------------------------------ main ------------------------------------------
if __name__ == "__main__":
    key = jax.random.PRNGKey(0)
    k_feat, k_adj, k_w, k_al, k_ar, k_res = jax.random.split(key, 6)

    gain = float(np.sqrt(2.0))  # calculate_gain('relu')

    # batch of node-feature matrices and random sparse graphs with self loops
    feat = jax.random.normal(k_feat, (BATCH, N_NODES, IN_FEATS), dtype=jnp.float32)
    adj = jax.random.bernoulli(k_adj, p=0.3, shape=(BATCH, N_NODES, N_NODES))
    adj = jnp.logical_or(adj, jnp.eye(N_NODES, dtype=bool)[None]).astype(jnp.float32)

    # fc: torch weight (H*D, F_in), xavier_normal(gain) -> stored transposed (F_in, H*D)
    std_fc = gain * np.sqrt(2.0 / (IN_FEATS + HD))
    w = jax.random.normal(k_w, (IN_FEATS, HD), dtype=jnp.float32) * std_fc

    # attn_l / attn_r: torch (1, H, D) -> stored (H, D)
    std_attn = gain * np.sqrt(2.0 / (NUM_HEADS * OUT_FEATS + OUT_FEATS))
    attn_l = jax.random.normal(k_al, (NUM_HEADS, OUT_FEATS), jnp.float32) * std_attn
    attn_r = jax.random.normal(k_ar, (NUM_HEADS, OUT_FEATS), jnp.float32) * std_attn

    # residual fc (in_feats != H*D -> Linear), stored transposed (F_in, H*D)
    res_w = jax.random.normal(k_res, (IN_FEATS, HD), dtype=jnp.float32) * std_fc

    # bias initialized to 0 (nn.init.constant_(self.bias, 0))
    bias = jnp.zeros((HD,), dtype=jnp.float32)

    # ---------------- host-side packing for the fused kernel ----------------
    w_np = np.asarray(w)
    res_np = np.asarray(res_w)
    al_np = np.asarray(attn_l)
    ar_np = np.asarray(attn_r)
    b_np = np.asarray(bias)

    # fold attention into the projection: wl[f, h] = sum_d w[f, h*D+d] * attn_l[h, d]
    w3 = w_np.reshape(IN_FEATS, NUM_HEADS, OUT_FEATS)
    wl = np.einsum('fhd,hd->fh', w3, al_np)                    # (F_in, H)
    wr = np.einsum('fhd,hd->fh', w3, ar_np)                    # (F_in, H)
    wl_packed = np.tile(wl, (1, N_NODES))                      # (F_in, 64): col u*H+h
    wr_packed = np.tile(wr, (1, N_NODES))                      # (F_in, 64): col u*H+h

    # fused weight (F_in+1, 384); the ones-column row carries the bias
    w_cat = np.zeros((F_AUG, W_TOT), np.float32)
    w_cat[:IN_FEATS, 0:HD] = w_np
    w_cat[:IN_FEATS, HD:2 * HD] = res_np
    w_cat[IN_FEATS, HD:2 * HD] = b_np
    w_cat[:IN_FEATS, 2 * HD:2 * HD + NH] = wl_packed
    w_cat[:IN_FEATS, 2 * HD + NH:] = wr_packed
    w_cat = jnp.asarray(w_cat)

    # constant selection / packing matrices (lane index = u*H + h)
    diag_sel = jnp.asarray(np.repeat(np.eye(N_NODES, dtype=np.float32),
                                     NUM_HEADS, axis=1))        # (16, 64): v == u
    r_rep = jnp.asarray(np.repeat(np.eye(N_NODES, dtype=np.float32),
                                  NUM_HEADS, axis=0))           # (64, 16): u == u'
    col_head = np.arange(HD) // OUT_FEATS
    hmask = (np.arange(NUM_HEADS)[:, None] == col_head[None, :]).astype(np.float32)
    hmask_tiled = jnp.asarray(np.tile(hmask, (N_NODES, 1)))     # (64, 128): j//D == h

    # per-graph input packing (bias ones-column; adjacency repeated per head lane)
    feat_aug = jnp.concatenate(
        [feat, jnp.ones((BATCH, N_NODES, 1), jnp.float32)], axis=-1)   # (B, 16, 33)
    adj_packed = jnp.repeat(adj, NUM_HEADS, axis=-1)                   # (B, 16, 64)

    # feat_drop = attn_drop = 0.0 -> dropout is identity; agg_mode='flatten'; activation=None

    out = gat_layer_forward(feat_aug, adj_packed, w_cat, diag_sel, r_rep, hmask_tiled)
    out = jax.block_until_ready(out)

    ref = jax.vmap(lambda f, a: gat_layer_ref(f, a, w, attn_l, attn_r, res_w, bias))(
        feat, adj)
    np.testing.assert_allclose(np.asarray(out), np.asarray(ref), rtol=1e-4, atol=1e-4)

    print("KERNEL_OK")
</pallas_src>

<mosaic_0001>
module attributes {stable_mosaic.version = 11 : i64} {
  func.func @gat_layer_kernel(%arg0: i32, %arg1: memref<1x16x33xf32, #tpu.memory_space<vmem>>, %arg2: memref<1x16x64xf32, #tpu.memory_space<vmem>>, %arg3: memref<33x384xf32, #tpu.memory_space<vmem>>, %arg4: memref<16x64xf32, #tpu.memory_space<vmem>>, %arg5: memref<64x16xf32, #tpu.memory_space<vmem>>, %arg6: memref<64x128xf32, #tpu.memory_space<vmem>>, %arg7: memref<1x16x128xf32, #tpu.memory_space<vmem>>) attributes {dimension_semantics = [#tpu.dimension_semantics<parallel>], iteration_bounds = array<i64: 8>, scalar_prefetch = 0 : i64, scratch_operands = 0 : i64, tpu.core_type = #tpu.core_type<tc>, window_params = [{transform_indices = @transform_0, window_bounds = array<i64: 1, 16, 33>}, {transform_indices = @transform_1, window_bounds = array<i64: 1, 16, 64>}, {pipeline_mode = #tpu.pipeline_mode<synchronous>, transform_indices = @transform_2, window_bounds = array<i64: 33, 384>}, {pipeline_mode = #tpu.pipeline_mode<synchronous>, transform_indices = @transform_3, window_bounds = array<i64: 16, 64>}, {pipeline_mode = #tpu.pipeline_mode<synchronous>, transform_indices = @transform_4, window_bounds = array<i64: 64, 16>}, {pipeline_mode = #tpu.pipeline_mode<synchronous>, transform_indices = @transform_5, window_bounds = array<i64: 64, 128>}, {transform_indices = @transform_6, window_bounds = array<i64: 1, 16, 128>}]} {
    %c0 = arith.constant 0 : index
    %c0_0 = arith.constant 0 : index
    %c0_1 = arith.constant 0 : index
    %0 = vector.load %arg1[%c0, %c0_0, %c0_1] : memref<1x16x33xf32, #tpu.memory_space<vmem>>, vector<1x16x33xf32>
    %1 = vector.shape_cast %0 : vector<1x16x33xf32> to vector<16x33xf32>
    %c0_2 = arith.constant 0 : index
    %c0_3 = arith.constant 0 : index
    %2 = vector.load %arg3[%c0_2, %c0_3] : memref<33x384xf32, #tpu.memory_space<vmem>>, vector<33x384xf32>
    %cst = arith.constant dense<0.000000e+00> : vector<16x384xf32>
    %3 = tpu.matmul %1, %2, %cst {dimension_numbers = #tpu.dot_dimension_numbers<[1], [0], [0], [1], [0, 0, 1, 1], [], []>} : vector<16x33xf32>, vector<33x384xf32>, vector<16x384xf32> -> vector<16x384xf32>
    %4 = vector.extract_strided_slice %3 {offsets = [0, 0], sizes = [16, 128], strides = [1, 1]} : vector<16x384xf32> to vector<16x128xf32>
    %5 = vector.extract_strided_slice %3 {offsets = [0, 128], sizes = [16, 128], strides = [1, 1]} : vector<16x384xf32> to vector<16x128xf32>
    %6 = vector.extract_strided_slice %3 {offsets = [0, 256], sizes = [16, 64], strides = [1, 1]} : vector<16x384xf32> to vector<16x64xf32>
    %7 = vector.extract_strided_slice %3 {offsets = [0, 320], sizes = [16, 64], strides = [1, 1]} : vector<16x384xf32> to vector<16x64xf32>
    %c0_4 = arith.constant 0 : index
    %c0_5 = arith.constant 0 : index
    %8 = vector.load %arg4[%c0_4, %c0_5] : memref<16x64xf32, #tpu.memory_space<vmem>>, vector<16x64xf32>
    %9 = arith.mulf %6, %8 : vector<16x64xf32>
    %cst_6 = arith.constant dense<0.000000e+00> : vector<64xf32>
    %10 = vector.multi_reduction <add>, %9, %cst_6 [0] : vector<16x64xf32> to vector<64xf32>
    %11 = vector.shape_cast %10 : vector<64xf32> to vector<1x64xf32>
    %c0_7 = arith.constant 0 : index
    %c0_8 = arith.constant 0 : index
    %c0_9 = arith.constant 0 : index
    %12 = vector.load %arg2[%c0_7, %c0_8, %c0_9] : memref<1x16x64xf32, #tpu.memory_space<vmem>>, vector<1x16x64xf32>
    %13 = vector.shape_cast %12 : vector<1x16x64xf32> to vector<16x64xf32>
    %14 = vector.broadcast %11 : vector<1x64xf32> to vector<16x64xf32>
    %15 = arith.addf %7, %14 : vector<16x64xf32>
    %cst_10 = arith.constant 0.000000e+00 : f32
    %16 = vector.broadcast %cst_10 : f32 to vector<16x64xf32>
    %17 = arith.cmpf oge, %15, %16 : vector<16x64xf32>
    %cst_11 = arith.constant 2.000000e-01 : f32
    %18 = vector.broadcast %cst_11 : f32 to vector<16x64xf32>
    %19 = arith.mulf %18, %15 : vector<16x64xf32>
    %20 = arith.select %17, %15, %19 : vector<16x64xi1>, vector<16x64xf32>
    %cst_12 = arith.constant 0.000000e+00 : f32
    %21 = vector.broadcast %cst_12 : f32 to vector<16x64xf32>
    %22 = arith.cmpf ogt, %13, %21 : vector<16x64xf32>
    %cst_13 = arith.constant -1.000000e+30 : f32
    %23 = vector.broadcast %cst_13 : f32 to vector<16x64xf32>
    %24 = arith.select %22, %20, %23 : vector<16x64xi1>, vector<16x64xf32>
    %cst_14 = arith.constant dense<0xFF800000> : vector<16xf32>
    %25 = vector.multi_reduction <maximumf>, %24, %cst_14 [1] : vector<16x64xf32> to vector<16xf32>
    %26 = vector.shape_cast %25 : vector<16xf32> to vector<16x1xf32>
    %27 = vector.broadcast %26 : vector<16x1xf32> to vector<16x64xf32>
    %28 = arith.subf %24, %27 : vector<16x64xf32>
    %29 = math.exp %28 : vector<16x64xf32>
    %30 = arith.mulf %29, %13 : vector<16x64xf32>
    %c0_15 = arith.constant 0 : index
    %c0_16 = arith.constant 0 : index
    %31 = vector.load %arg6[%c0_15, %c0_16] : memref<64x128xf32, #tpu.memory_space<vmem>>, vector<64x128xf32>
    %cst_17 = arith.constant dense<0.000000e+00> : vector<16x128xf32>
    %32 = tpu.matmul %30, %31, %cst_17 {dimension_numbers = #tpu.dot_dimension_numbers<[1], [0], [0], [1], [0, 0, 1, 1], [], []>} : vector<16x64xf32>, vector<64x128xf32>, vector<16x128xf32> -> vector<16x128xf32>
    %cst_18 = arith.constant 1.000000e-30 : f32
    %33 = vector.broadcast %cst_18 : f32 to vector<16x128xf32>
    %34 = arith.maximumf %32, %33 : vector<16x128xf32>
    %35 = tpu.reciprocal %34 {approx = true} : vector<16x128xf32> -> vector<16x128xf32>
    %36 = arith.mulf %34, %35 : vector<16x128xf32>
    %cst_19 = arith.constant 2.000000e+00 : f32
    %37 = vector.broadcast %cst_19 : f32 to vector<16x128xf32>
    %38 = arith.subf %37, %36 : vector<16x128xf32>
    %39 = arith.mulf %35, %38 : vector<16x128xf32>
    %c0_20 = arith.constant 0 : index
    %c0_21 = arith.constant 0 : index
    %40 = vector.load %arg5[%c0_20, %c0_21] : memref<64x16xf32, #tpu.memory_space<vmem>>, vector<64x16xf32>
    %cst_22 = arith.constant dense<0.000000e+00> : vector<64x128xf32>
    %41 = tpu.matmul %40, %4, %cst_22 {dimension_numbers = #tpu.dot_dimension_numbers<[1], [0], [0], [1], [0, 0, 1, 1], [], []>} : vector<64x16xf32>, vector<16x128xf32>, vector<64x128xf32> -> vector<64x128xf32>
    %42 = arith.mulf %41, %31 : vector<64x128xf32>
    %cst_23 = arith.constant dense<0.000000e+00> : vector<16x128xf32>
    %43 = tpu.matmul %30, %42, %cst_23 {dimension_numbers = #tpu.dot_dimension_numbers<[1], [0], [0], [1], [0, 0, 1, 1], [], []>} : vector<16x64xf32>, vector<64x128xf32>, vector<16x128xf32> -> vector<16x128xf32>
    %44 = arith.mulf %43, %39 : vector<16x128xf32>
    %45 = arith.addf %5, %44 : vector<16x128xf32>
    %c0_24 = arith.constant 0 : index
    %c0_25 = arith.constant 0 : index
    %c0_26 = arith.constant 0 : index
    %46 = vector.load %arg7[%c0_24, %c0_25, %c0_26] : memref<1x16x128xf32, #tpu.memory_space<vmem>>, vector<1x16x128xf32>
    %47 = vector.shape_cast %46 : vector<1x16x128xf32> to vector<16x128xf32>
    %48 = vector.shape_cast %45 : vector<16x128xf32> to vector<1x16x128xf32>
    tpu.vector_store %arg7[%c0_24, %c0_25, %c0_26], %48 {strides = array<i32>} : memref<1x16x128xf32, #tpu.memory_space<vmem>>, vector<1x16x128xf32>,
    return
  }
  func.func @transform_0(%arg0: i32) -> (i32, i32, i32) {
    %c0_i32 = arith.constant 0 : i32
    %c0_i32_0 = arith.constant 0 : i32
    %c0_i32_1 = arith.constant 0 : i32
    return %arg0, %c0_i32, %c0_i32_0 : i32, i32, i32
  }
  func.func @transform_1(%arg0: i32) -> (i32, i32, i32) {
    %c0_i32 = arith.constant 0 : i32
    %c0_i32_0 = arith.constant 0 : i32
    %c0_i32_1 = arith.constant 0 : i32
    return %arg0, %c0_i32, %c0_i32_0 : i32, i32, i32
  }
  func.func @transform_2(%arg0: i32) -> (i32, i32) {
    %c0_i32 = arith.constant 0 : i32
    %c0_i32_0 = arith.constant 0 : i32
    %c0_i32_1 = arith.constant 0 : i32
    return %c0_i32, %c0_i32_0 : i32, i32
  }
  func.func @transform_3(%arg0: i32) -> (i32, i32) {
    %c0_i32 = arith.constant 0 : i32
    %c0_i32_0 = arith.constant 0 : i32
    %c0_i32_1 = arith.constant 0 : i32
    return %c0_i32, %c0_i32_0 : i32, i32
  }
  func.func @transform_4(%arg0: i32) -> (i32, i32) {
    %c0_i32 = arith.constant 0 : i32
    %c0_i32_0 = arith.constant 0 : i32
    %c0_i32_1 = arith.constant 0 : i32
    return %c0_i32, %c0_i32_0 : i32, i32
  }
  func.func @transform_5(%arg0: i32) -> (i32, i32) {
    %c0_i32 = arith.constant 0 : i32
    %c0_i32_0 = arith.constant 0 : i32
    %c0_i32_1 = arith.constant 0 : i32
    return %c0_i32, %c0_i32_0 : i32, i32
  }
  func.func @transform_6(%arg0: i32) -> (i32, i32, i32) {
    %c0_i32 = arith.constant 0 : i32
    %c0_i32_0 = arith.constant 0 : i32
    %c0_i32_1 = arith.constant 0 : i32
    return %arg0, %c0_i32, %c0_i32_0 : i32, i32, i32
  }
}

</mosaic_0001>

<llo_original>
// kernel: tpu_custom_call.1
$region0: #{tpu_custom_call.1}
  #allocation0 [shape = 'u32[]', space=smem, size = 0x4, offset = 0x4, fixed_abs, tag = 'smem constant byte address 0x4 - core index']
  #allocation1 [shape = 'u32[144,128]{1,0:T(1,128)}', space=vmem, size = 0x12000, scoped, tag = 'internal scratch']
  %s0 = inlined_call_operand.hbm [shape: f32[8,16,33], index: 0, kind: input, shape index: {}]
  %s1 = inlined_call_operand.hbm [shape: f32[8,16,64], index: 1, kind: input, shape index: {}]
  %s2 = inlined_call_operand.hbm [shape: f32[33,384], index: 2, kind: input, shape index: {}]
  %s3 = inlined_call_operand.vmem [shape: f32[16,64], index: 3, kind: input, shape index: {}]
  %s4 = inlined_call_operand.vmem [shape: f32[64,16], index: 4, kind: input, shape index: {}]
  %s5 = inlined_call_operand.vmem [shape: f32[64,128], index: 5, kind: input, shape index: {}]
  %s6 = inlined_call_operand.hbm [shape: f32[8,16,128], index: 6, kind: output, shape index: {}]
  %s7 = sld [smem:[#allocation0]]
  $region69: #{tpu_custom_call.1} parent=0
    _
  %s9 = ssub.s32 1, %s7
  %s10 = scalar_select 0, %s9, %s7
  $region1: #{tpu_custom_call.1} parent=0
    #allocation2 [shape = 'u8[16384]{0}', space=vmem, size = 0x4000, scoped, tag = 'input window, operand 0']
    #allocation3 [shape = 's32[2]{0}', space=sflag, size = 0x8, scoped, tag = 'scoped memory for tpu_custom_call.1']
    #allocation4 [shape = 's32[2]{0}', space=sflag, size = 0x8, scoped, tag = 'scoped memory for tpu_custom_call.1']
    #allocation5 [shape = 'u8[16384]{0}', space=vmem, size = 0x4000, scoped, tag = 'input window, operand 1']
    #allocation6 [shape = 's32[2]{0}', space=sflag, size = 0x8, scoped, tag = 'scoped memory for tpu_custom_call.1']
    #allocation7 [shape = 'u8[61440]{0}', space=vmem, size = 0xf000, scoped, tag = 'input window, operand 2, single buffered']
    #allocation8 [shape = 'u8[16384]{0}', space=vmem, size = 0x4000, scoped, tag = 'output window, operand 0']
    %11 = vsyncpa [#allocation3], 0
    %s12 = scalar_lea.sflag [#allocation3], 1
    %13 = vsyncpa %s12, 0
    %14 = vsyncpa [#allocation6], 0
    %s15 = scalar_lea.sflag [#allocation6], 1
    %16 = vsyncpa %s15, 0
    %17 = vsyncpa [#allocation4], 0
    %s18 = scalar_lea.sflag [#allocation4], 1
    %19 = vsyncpa %s18, 0
    loop: start=0, step=1, limit=10
    $region2: #{tpu_custom_call.1} parent=1 // loop_pre_header
      _
    $region3: #{tpu_custom_call.1} parent=1 // loop_header
      %s21 = sphi 0, %s25
      %p22 = scmp.ge.s32.totalorder %s21, 10
      %s31 = sphi 0, %s33
      %s34 = sphi 0, %s31
      %s35 = sphi 0, %s34
      %s51 = sphi 0, %s35
      %s57 = sphi 0, %s59
      %s60 = sphi 0, %s57
      %s61 = sphi 0, %s60
      %s77 = sphi 0, %s61
      %s81 = sphi 0, %s81
      %s83 = sphi 0, %s81
      %s84 = sphi 0, %s83
      %s98 = sphi 0, %s84
      %s102 = sphi 0, %s102
      %s104 = sphi 0, %s102
      %s105 = sphi 0, %s104
      %s119 = sphi 0, %s105
      %s123 = sphi 0, %s123
      %s125 = sphi 0, %s123
      %s126 = sphi 0, %s125
      %s140 = sphi 0, %s126
      %s144 = sphi 0, %s144
      %s146 = sphi 0, %s144
      %s147 = sphi 0, %s146
      %s161 = sphi 0, %s147
      %s167 = sphi 0, %s169
      %s170 = sphi 0, %s167
      %s171 = sphi 0, %s170
      %s187 = sphi 0, %s171
    $region4: #{tpu_custom_call.1} parent=1 // loop_header_branch
      %24 = sbr.rel (%p22) target = $region8
    $region5: #{tpu_custom_call.1} parent=1 // loop_body
      %s26 = ssub.s32 %s21, 1
      %s27 = ssub.s32 %s21, 2
      %s28 = sadd.s32 %s21, 1
      %s29 = ssub.s32 %s21, %s28
      %p30 = scmp.eq.s32.totalorder %s29, 0
      %s32 = sadd.s32 %s31, 1
      %s33 = scalar_select %p30, %s31, %s32
      %p36 = pneg %p30
      %p37 = scmp.eq.s32.totalorder %s21, 7
      %p38 = por %p36, %p37
      %p39 = scmp.ne.s32.totalorder %s31, %s34
      %p40 = scmp.eq.s32.totalorder %s21, 0
      %p41 = por %p39, %p40
      %p42 = scmp.ne.s32.totalorder %s31, %s34
      %p43 = scmp.eq.s32.totalorder %s26, 7
      %p44 = por %p42, %p43
      %p45 = scmp.ne.s32.totalorder %s34, %s35
      %p46 = scmp.eq.s32.totalorder %s26, 0
      %p47 = por %p45, %p46
      %p48 = scmp.ne.s32.totalorder %s34, %s35
      %p49 = scmp.eq.s32.totalorder %s27, 7
      %p50 = por %p48, %p49
      %p52 = scmp.ne.s32.totalorder %s35, %s51
      %p53 = scmp.eq.s32.totalorder %s27, 0
      %p54 = por %p52, %p53
      %s55 = ssub.s32 %s21, %s28
      %p56 = scmp.eq.s32.totalorder %s55, 0
      %s58 = sadd.s32 %s57, 1
      %s59 = scalar_select %p56, %s57, %s58
      %p62 = pneg %p56
      %p63 = scmp.eq.s32.totalorder %s21, 7
      %p64 = por %p62, %p63
      %p65 = scmp.ne.s32.totalorder %s57, %s60
      %p66 = scmp.eq.s32.totalorder %s21, 0
      %p67 = por %p65, %p66
      %p68 = scmp.ne.s32.totalorder %s57, %s60
      %p69 = scmp.eq.s32.totalorder %s26, 7
      %p70 = por %p68, %p69
      %p71 = scmp.ne.s32.totalorder %s60, %s61
      %p72 = scmp.eq.s32.totalorder %s26, 0
      %p73 = por %p71, %p72
      %p74 = scmp.ne.s32.totalorder %s60, %s61
      %p75 = scmp.eq.s32.totalorder %s27, 7
      %p76 = por %p74, %p75
      %p78 = scmp.ne.s32.totalorder %s61, %s77
      %p79 = scmp.eq.s32.totalorder %s27, 0
      %p80 = por %p78, %p79
      %s82 = sadd.s32 %s81, 1
      %p85 = scmp.eq.s32.totalorder %s21, 7
      %p86 = scmp.ne.s32.totalorder %s81, %s83
      %p87 = scmp.eq.s32.totalorder %s21, 0
      %p88 = por %p86, %p87
      %p89 = scmp.ne.s32.totalorder %s81, %s83
      %p90 = scmp.eq.s32.totalorder %s26, 7
      %p91 = por %p89, %p90
      %p92 = scmp.ne.s32.totalorder %s83, %s84
      %p93 = scmp.eq.s32.totalorder %s26, 0
      %p94 = por %p92, %p93
      %p95 = scmp.ne.s32.totalorder %s83, %s84
      %p96 = scmp.eq.s32.totalorder %s27, 7
      %p97 = por %p95, %p96
      %p99 = scmp.ne.s32.totalorder %s84, %s98
      %p100 = scmp.eq.s32.totalorder %s27, 0
      %p101 = por %p99, %p100
      %s103 = sadd.s32 %s102, 1
      %p106 = scmp.eq.s32.totalorder %s21, 7
      %p107 = scmp.ne.s32.totalorder %s102, %s104
      %p108 = scmp.eq.s32.totalorder %s21, 0
      %p109 = por %p107, %p108
      %p110 = scmp.ne.s32.totalorder %s102, %s104
      %p111 = scmp.eq.s32.totalorder %s26, 7
      %p112 = por %p110, %p111
      %p113 = scmp.ne.s32.totalorder %s104, %s105
      %p114 = scmp.eq.s32.totalorder %s26, 0
      %p115 = por %p113, %p114
      %p116 = scmp.ne.s32.totalorder %s104, %s105
      %p117 = scmp.eq.s32.totalorder %s27, 7
      %p118 = por %p116, %p117
      %p120 = scmp.ne.s32.totalorder %s105, %s119
      %p121 = scmp.eq.s32.totalorder %s27, 0
      %p122 = por %p120, %p121
      %s124 = sadd.s32 %s123, 1
      %p127 = scmp.eq.s32.totalorder %s21, 7
      %p128 = scmp.ne.s32.totalorder %s123, %s125
      %p129 = scmp.eq.s32.totalorder %s21, 0
      %p130 = por %p128, %p129
      %p131 = scmp.ne.s32.totalorder %s123, %s125
      %p132 = scmp.eq.s32.totalorder %s26, 7
      %p133 = por %p131, %p132
      %p134 = scmp.ne.s32.totalorder %s125, %s126
      %p135 = scmp.eq.s32.totalorder %s26, 0
      %p136 = por %p134, %p135
      %p137 = scmp.ne.s32.totalorder %s125, %s126
      %p138 = scmp.eq.s32.totalorder %s27, 7
      %p139 = por %p137, %p138
      %p141 = scmp.ne.s32.totalorder %s126, %s140
      %p142 = scmp.eq.s32.totalorder %s27, 0
      %p143 = por %p141, %p142
      %s145 = sadd.s32 %s144, 1
      %p148 = scmp.eq.s32.totalorder %s21, 7
      %p149 = scmp.ne.s32.totalorder %s144, %s146
      %p150 = scmp.eq.s32.totalorder %s21, 0
      %p151 = por %p149, %p150
      %p152 = scmp.ne.s32.totalorder %s144, %s146
      %p153 = scmp.eq.s32.totalorder %s26, 7
      %p154 = por %p152, %p153
      %p155 = scmp.ne.s32.totalorder %s146, %s147
      %p156 = scmp.eq.s32.totalorder %s26, 0
      %p157 = por %p155, %p156
      %p158 = scmp.ne.s32.totalorder %s146, %s147
      %p159 = scmp.eq.s32.totalorder %s27, 7
      %p160 = por %p158, %p159
      %p162 = scmp.ne.s32.totalorder %s147, %s161
      %p163 = scmp.eq.s32.totalorder %s27, 0
      %p164 = por %p162, %p163
      %s165 = ssub.s32 %s21, %s28
      %p166 = scmp.eq.s32.totalorder %s165, 0
      %s168 = sadd.s32 %s167, 1
      %s169 = scalar_select %p166, %s167, %s168
      %p172 = pneg %p166
      %p173 = scmp.eq.s32.totalorder %s21, 7
      %p174 = por %p172, %p173
      %p175 = scmp.ne.s32.totalorder %s167, %s170
      %p176 = scmp.eq.s32.totalorder %s21, 0
      %p177 = por %p175, %p176
      %p178 = scmp.ne.s32.totalorder %s167, %s170
      %p179 = scmp.eq.s32.totalorder %s26, 7
      %p180 = por %p178, %p179
      %p181 = scmp.ne.s32.totalorder %s170, %s171
      %p182 = scmp.eq.s32.totalorder %s26, 0
      %p183 = por %p181, %p182
      %p184 = scmp.ne.s32.totalorder %s170, %s171
      %p185 = scmp.eq.s32.totalorder %s27, 7
      %p186 = por %p184, %p185
      %p188 = scmp.ne.s32.totalorder %s171, %s187
      %p189 = scmp.eq.s32.totalorder %s27, 0
      %p190 = por %p188, %p189
      %p191 = scmp.le.s32.totalorder 1, %s21
      %p192 = scmp.lt.s32.totalorder %s21, 9
      %p193 = pnand %p191, %p192
      %p194 = pneg %p193
      // Predicated region
      $region9: #{tpu_custom_call.1} parent=5 // pred_check
        _
      $region10: #{tpu_custom_call.1} parent=5 // pred_check_branch
        %196 = sbr.rel (%p193) target = $region12
      $region11: #{tpu_custom_call.1} parent=5 // pred_region
        %s197 = ssub.s32 %s21, 1
        // Predicated region
        $region13: #{tpu_custom_call.1} parent=11 // pred_check
          %p198 = pneg %p94
        $region14: #{tpu_custom_call.1} parent=11 // pred_check_branch
          %200 = sbr.rel (%p198) target = $region16
        $region15: #{tpu_custom_call.1} parent=11 // pred_region
          %s202 = ssub.s32 1920, 1920
          %203 = vsyncadd [#allocation6], %s202
          %s204 = sshll.u32 [#allocation7], 4
          %s205 = int_to_ptr.vmem [resolvable:$true] %s204
          %210 = dma.hbm_to_vmem [thread:$0]  %s2, 1920, %s205, [#allocation6], 384, 384, 24
        $region16: #{tpu_custom_call.1} parent=11 // pred_fallthru
          _
        // Predicated region
        $region17: #{tpu_custom_call.1} parent=11 // pred_check
          %p211 = pneg %p115
        $region18: #{tpu_custom_call.1} parent=11 // pred_check_branch
          %213 = sbr.rel (%p211) target = $region20
        $region19: #{tpu_custom_call.1} parent=11 // pred_region
          _
        $region20: #{tpu_custom_call.1} parent=11 // pred_fallthru
          _
        // Predicated region
        $region21: #{tpu_custom_call.1} parent=11 // pred_check
          %p214 = pneg %p136
        $region22: #{tpu_custom_call.1} parent=11 // pred_check_branch
          %216 = sbr.rel (%p214) target = $region24
        $region23: #{tpu_custom_call.1} parent=11 // pred_region
          _
        $region24: #{tpu_custom_call.1} parent=11 // pred_fallthru
          _
        // Predicated region
        $region25: #{tpu_custom_call.1} parent=11 // pred_check
          %p217 = pneg %p157
        $region26: #{tpu_custom_call.1} parent=11 // pred_check_branch
          %219 = sbr.rel (%p217) target = $region28
        $region27: #{tpu_custom_call.1} parent=11 // pred_region
          _
        $region28: #{tpu_custom_call.1} parent=11 // pred_fallthru
          _
      $region12: #{tpu_custom_call.1} parent=5 // pred_fallthru
        _
      %p220 = scmp.lt.s32.totalorder %s21, 8
      // Predicated region
      $region29: #{tpu_custom_call.1} parent=5 // pred_check
        %p221 = pneg %p220
      $region30: #{tpu_custom_call.1} parent=5 // pred_check_branch
        %223 = sbr.rel (%p221) target = $region32
      $region31: #{tpu_custom_call.1} parent=5 // pred_region
        // Predicated region
        $region33: #{tpu_custom_call.1} parent=31 // pred_check
          %p224 = pneg %p41
        $region34: #{tpu_custom_call.1} parent=31 // pred_check_branch
          %226 = sbr.rel (%p224) target = $region36
        $region35: #{tpu_custom_call.1} parent=31 // pred_region
          %s227 = sand.u32 %s31, 1
          %s228 = scalar_lea.sflag [#allocation3], %s227
          %s229 = sand.u32 %s31, 1
          %s230 = smul.addr %s229, 16
          %s231 = scalar_lea.vmem [#allocation2], %s230
          %s233 = ssub.s32 256, 256
          %234 = vsyncadd %s228, %s233
          %s235 = smul.addr %s21, 2
          %s236 = smul.addr %s235, 128
          %s237 = scalar_lea.hbm %s0, %s236
          %s238 = sshll.u32 %s231, 4
          %s239 = int_to_ptr.vmem [resolvable:$true] %s238
          %244 = dma.hbm_to_vmem [thread:$0]  %s237, 256, %s239, %s228, 128, 128, 8
        $region36: #{tpu_custom_call.1} parent=31 // pred_fallthru
          _
        // Predicated region
        $region37: #{tpu_custom_call.1} parent=31 // pred_check
          %p245 = pneg %p67
        $region38: #{tpu_custom_call.1} parent=31 // pred_check_branch
          %247 = sbr.rel (%p245) target = $region40
        $region39: #{tpu_custom_call.1} parent=31 // pred_region
          %s248 = sand.u32 %s21, 1
          %s249 = scalar_lea.sflag [#allocation6], %s248
          %s250 = sand.u32 %s57, 1
          %s251 = smul.addr %s250, 16
          %s252 = scalar_lea.vmem [#allocation5], %s251
          %s254 = ssub.s32 256, 256
          %255 = vsyncadd %s249, %s254
          %s256 = smul.addr %s21, 2
          %s257 = smul.addr %s256, 128
          %s258 = scalar_lea.hbm %s1, %s257
          %s259 = sshll.u32 %s252, 4
          %s260 = int_to_ptr.vmem [resolvable:$true] %s259
          %265 = dma.hbm_to_vmem [thread:$0]  %s258, 256, %s260, %s249, 128, 128, 8
        $region40: #{tpu_custom_call.1} parent=31 // pred_fallthru
          _
      $region32: #{tpu_custom_call.1} parent=5 // pred_fallthru
        _
      %p266 = scmp.le.s32.totalorder 1, %s21
      %p267 = scmp.lt.s32.totalorder %s21, 9
      %p268 = pnand %p266, %p267
      %p269 = pneg %p268
      // Predicated region
      $region41: #{tpu_custom_call.1} parent=5 // pred_check
        _
      $region42: #{tpu_custom_call.1} parent=5 // pred_check_branch
        %271 = sbr.rel (%p268) target = $region44
      $region43: #{tpu_custom_call.1} parent=5 // pred_region
        %s272 = ssub.s32 %s21, 1
        %s273 = sand.u32 %s34, 1
        %s274 = scalar_lea.sflag [#allocation3], %s273
        %s275 = sand.u32 %s34, 1
        %s276 = smul.addr %s275, 16
        %s277 = scalar_lea.vmem [#allocation2], %s276
        // Predicated region
        $region45: #{tpu_custom_call.1} parent=43 // pred_check
          %p278 = pneg %p47
        $region46: #{tpu_custom_call.1} parent=43 // pred_check_branch
          %280 = sbr.rel (%p278) target = $region48
        $region47: #{tpu_custom_call.1} parent=43 // pred_region
          %281 = dma.done %s274, 256
        $region48: #{tpu_custom_call.1} parent=43 // pred_fallthru
          _
        %s282 = sand.u32 %s26, 1
        %s283 = scalar_lea.sflag [#allocation6], %s282
        %s284 = sand.u32 %s60, 1
        %s285 = smul.addr %s284, 16
        %s286 = scalar_lea.vmem [#allocation5], %s285
        // Predicated region
        $region49: #{tpu_custom_call.1} parent=43 // pred_check
          %p287 = pneg %p73
        $region50: #{tpu_custom_call.1} parent=43 // pred_check_branch
          %289 = sbr.rel (%p287) target = $region52
        $region51: #{tpu_custom_call.1} parent=43 // pred_region
          %290 = dma.done %s283, 256
        $region52: #{tpu_custom_call.1} parent=43 // pred_fallthru
          _
        // Predicated region
        $region53: #{tpu_custom_call.1} parent=43 // pred_check
          %p291 = pneg %p94
        $region54: #{tpu_custom_call.1} parent=43 // pred_check_branch
          %293 = sbr.rel (%p291) target = $region56
        $region55: #{tpu_custom_call.1} parent=43 // pred_region
          %294 = dma.done [#allocation6], 1920
        $region56: #{tpu_custom_call.1} parent=43 // pred_fallthru
          _
        %s295 = sand.u32 %s34, 1
        %s296 = scalar_lea.sflag [#allocation3], %s295
        %s297 = sand.u32 %s34, 1
        %s298 = smul.addr %s297, 16
        %s299 = scalar_lea.vmem [#allocation2], %s298
        %p300 = pneg %p47
        %p301 = pneg %p44
        %s302 = sand.u32 %s26, 1
        %s303 = scalar_lea.sflag [#allocation6], %s302
        %s304 = sand.u32 %s60, 1
        %s305 = smul.addr %s304, 16
        %s306 = scalar_lea.vmem [#allocation5], %s305
        %p307 = pneg %p73
        %p308 = pneg %p70
        %p309 = pneg %p94
        %p310 = pneg %p91
        %p311 = pneg %p115
        %p312 = pneg %p112
        %p313 = pneg %p136
        %p314 = pneg %p133
        %p315 = pneg %p157
        %p316 = pneg %p154
        %p317 = pneg %p183
        %p318 = pneg %p180
        %s319 = sand.u32 %s170, 1
        %s320 = scalar_lea.sflag [#allocation4], %s319
        %s321 = sand.u32 %s170, 1
        %s322 = smul.addr %s321, 16
        %s323 = scalar_lea.vmem [#allocation8], %s322
        %v324 = vld [vmem:[%s277] sm:$0xff]
        %v325 = vld [vmem:[%s277 + $0x8] sm:$0xff]
        %v326 = vld [vmem:[#allocation7] sm:$0xff]
        %v327 = vld [vmem:[#allocation7 + $0x8] sm:$0xff]
        %v328 = vld [vmem:[#allocation7 + $0x10] sm:$0xff]
        %v329 = vld [vmem:[#allocation7 + $0x18] sm:$0xff]
        %v330 = vld [vmem:[#allocation7 + $0x20] sm:$0xff]
        %v331 = vld [vmem:[#allocation7 + $0x28] sm:$0xff]
        %v332 = vld [vmem:[#allocation7 + $0x30] sm:$0xff]
        %v333 = vld [vmem:[#allocation7 + $0x38] sm:$0xff]
        %v334 = vld [vmem:[#allocation7 + $0x40] sm:$0xff]
        %v335 = vld [vmem:[#allocation7 + $0x48] sm:$0xff]
        %v336 = vld [vmem:[#allocation7 + $0x50] sm:$0xff]
        %v337 = vld [vmem:[#allocation7 + $0x58] sm:$0xff]
        %v338 = vld [vmem:[#allocation7 + $0x60] sm:$0x1]
        %v339 = vld [vmem:[#allocation7 + $0x68] sm:$0x1]
        %v340 = vld [vmem:[#allocation7 + $0x70] sm:$0x1]
        %vm341 = vcmask 269312
        %v343 = vsel %vm341, %v324, 0
        %v346 = vsel %vm341, %v325, 0
        %vm348 = vcmask 1040384
        %v350 = vsel %vm348, %v338, 0
        %v353 = vsel %vm348, %v339, 0
        %v356 = vsel %vm348, %v340, 0
        %358 = vmatprep.subr.mxu0 %v327
        %359 = vmatpush1.msra.mxu0 %v326
        %360 = vmatprep.subr.mxu0 %v330
        %361 = vmatpush1.msra.mxu0 %v329
        %362 = vmatprep.subr.mxu0 %v333
        %363 = vmatpush1.msra.mxu0 %v332
        %364 = vmatprep.subr.mxu0 %v336
        %365 = vmatpush1.msra.mxu0 %v335
        %366 = vmatprep.subr.mxu0 %v353
        %367 = vmatpush1.msra.mxu0 %v350
        %368 = vmatprep.subr.mxu0 0.0
        %369 = vmatpush1.msra.mxu0 0.0
        %370 = vmatprep.subr.mxu0 0.0
        %371 = vmatpush1.msra.mxu0 0.0
        %372 = vmatprep.subr.mxu0 0.0
        %373 = vmatpush1.msra.mxu0 0.0
        %374 = vmatprep.subr.mxu0 0.0
        %375 = vmatpush1.msra.mxu0 0.0
        %376 = vmatprep.subr.mxu0 0.0
        %377 = vmatpush1.msra.mxu0 0.0
        %378 = vmatprep.subr.mxu0 0.0
        %379 = vmatpush1.msra.mxu0 0.0
        %380 = vmatprep.subr.mxu0 0.0
        %381 = vmatpush1.msra.mxu0 0.0
        %382 = vmatprep.subr.mxu0 0.0
        %383 = vmatpush1.msra.mxu0 0.0
        %384 = vmatprep.subr.mxu0 0.0
        %385 = vmatpush1.msra.mxu0 0.0
        %386 = vmatprep.subr.mxu0 0.0
        %387 = vmatpush1.msra.mxu0 0.0
        %388 = vmatprep.subr.mxu0 0.0
        %389 = vmatpush1.msra.mxu0 0.0
        %390 = vmatprep.subr.mxu0 0.0
        %391 = vmatpush1.msra.mxu0 0.0
        %392 = vmatprep.subr.mxu0 0.0
        %393 = vmatpush1.msra.mxu0 0.0
        %394 = vmatprep.subr.mxu0 0.0
        %395 = vmatpush1.msra.mxu0 0.0
        %396 = vmatprep.subr.mxu0 0.0
        %397 = vmatpush1.msra.mxu0 0.0
        %398 = vmatprep.subr.mxu0 0.0
        %399 = vmatpush1.msra.mxu0 0.0
        %400 = vmatprep.subr.mxu0 0.0
        %401 = vmatpush1.msra.mxu0 0.0
        %402 = vmatprep.subr.mxu0 0.0
        %403 = vmatpush1.msra.mxu0 0.0
        %404 = vmatprep.subr.mxu0 0.0
        %405 = vmatpush1.msra.mxu0 0.0
        %406 = vmatprep.subr.mxu0 0.0
        %407 = vmatpush1.msra.mxu0 0.0
        %408 = vmatprep.subr.mxu0 0.0
        %409 = vmatpush1.msra.mxu0 0.0
        %410 = vmatprep.subr.mxu0 0.0
        %411 = vmatpush1.msra.mxu0 0.0
        %412 = vmatprep.subr.mxu0 0.0
        %413 = vmatpush1.msra.mxu0 0.0
        %414 = vmatprep.subr.mxu0 0.0
        %415 = vmatpush1.msra.mxu0 0.0
        %416 = vmatprep.subr.mxu0 0.0
        %417 = vmatpush1.msra.mxu0 0.0
        %418 = vmatprep.subr.mxu0 0.0
        %419 = vmatpush1.msra.mxu0 0.0
        %420 = vmatprep.subr.mxu0 0.0
        %421 = vmatpush1.msra.mxu0 0.0
        %422 = vmatprep.mubr.f32.mxu0 0.0
        %423 = vmatmul.mubr.f32.gmra.mrb[0].mxu0 %v343
        %v424 = vpop.f32.mrb[0].mxu0
        %v425 = vadd.f32 0.0, %v424
        %v426 = vpop.f32.mrb[0].mxu0
        %v427 = vadd.f32 0.0, %v426
        %428 = vmatprep.mubr.f32.mxu0 0.0
        %429 = vmatmul.mubr.f32.gmra.mrb[0].mxu0 %v346
        %v430 = vpop.f32.mrb[0].mxu0
        %v431 = vadd.f32 0.0, %v430
        %v432 = vpop.f32.mrb[0].mxu0
        %v433 = vadd.f32 0.0, %v432
        %434 = vdwg.mxu0
        %435 = vmatprep.subr.mxu0 0.0
        %436 = vmatpush1.msra.mxu0 %v328
        %437 = vmatprep.subr.mxu0 0.0
        %438 = vmatpush1.msra.mxu0 %v331
        %439 = vmatprep.subr.mxu0 0.0
        %440 = vmatpush1.msra.mxu0 %v334
        %441 = vmatprep.subr.mxu0 0.0
        %442 = vmatpush1.msra.mxu0 %v337
        %443 = vmatprep.subr.mxu0 0.0
        %444 = vmatpush1.msra.mxu0 %v356
        %445 = vmatprep.subr.mxu0 0.0
        %446 = vmatpush1.msra.mxu0 0.0
        %447 = vmatprep.subr.mxu0 0.0
        %448 = vmatpush1.msra.mxu0 0.0
        %449 = vmatprep.subr.mxu0 0.0
        %450 = vmatpush1.msra.mxu0 0.0
        %451 = vmatprep.subr.mxu0 0.0
        %452 = vmatpush1.msra.mxu0 0.0
        %453 = vmatprep.subr.mxu0 0.0
        %454 = vmatpush1.msra.mxu0 0.0
        %455 = vmatprep.subr.mxu0 0.0
        %456 = vmatpush1.msra.mxu0 0.0
        %457 = vmatprep.subr.mxu0 0.0
        %458 = vmatpush1.msra.mxu0 0.0
        %459 = vmatprep.subr.mxu0 0.0
        %460 = vmatpush1.msra.mxu0 0.0
        %461 = vmatprep.subr.mxu0 0.0
        %462 = vmatpush1.msra.mxu0 0.0
        %463 = vmatprep.subr.mxu0 0.0
        %464 = vmatpush1.msra.mxu0 0.0
        %465 = vmatprep.subr.mxu0 0.0
        %466 = vmatpush1.msra.mxu0 0.0
        %467 = vmatprep.subr.mxu0 0.0
        %468 = vmatpush1.msra.mxu0 0.0
        %469 = vmatprep.subr.mxu0 0.0
        %470 = vmatpush1.msra.mxu0 0.0
        %471 = vmatprep.subr.mxu0 0.0
        %472 = vmatpush1.msra.mxu0 0.0
        %473 = vmatprep.subr.mxu0 0.0
        %474 = vmatpush1.msra.mxu0 0.0
        %475 = vmatprep.subr.mxu0 0.0
        %476 = vmatpush1.msra.mxu0 0.0
        %477 = vmatprep.subr.mxu0 0.0
        %478 = vmatpush1.msra.mxu0 0.0
        %479 = vmatprep.subr.mxu0 0.0
        %480 = vmatpush1.msra.mxu0 0.0
        %481 = vmatprep.subr.mxu0 0.0
        %482 = vmatpush1.msra.mxu0 0.0
        %483 = vmatprep.subr.mxu0 0.0
        %484 = vmatpush1.msra.mxu0 0.0
        %485 = vmatprep.subr.mxu0 0.0
        %486 = vmatpush1.msra.mxu0 0.0
        %487 = vmatprep.subr.mxu0 0.0
        %488 = vmatpush1.msra.mxu0 0.0
        %489 = vmatprep.subr.mxu0 0.0
        %490 = vmatpush1.msra.mxu0 0.0
        %491 = vmatprep.subr.mxu0 0.0
        %492 = vmatpush1.msra.mxu0 0.0
        %493 = vmatprep.subr.mxu0 0.0
        %494 = vmatpush1.msra.mxu0 0.0
        %495 = vmatprep.subr.mxu0 0.0
        %496 = vmatpush1.msra.mxu0 0.0
        %497 = vmatprep.subr.mxu0 0.0
        %498 = vmatpush1.msra.mxu0 0.0
        %499 = vmatprep.mubr.f32.mxu0 0.0
        %500 = vmatmul.mubr.f32.gmra.mrb[0].mxu0 %v343
        %v501 = vpop.f32.mrb[0].mxu0
        %v502 = vadd.f32 0.0, %v501
        %v503 = vpop.f32.mrb[0].mxu0
        %504 = vmatprep.mubr.f32.mxu0 0.0
        %505 = vmatmul.mubr.f32.gmra.mrb[0].mxu0 %v346
        %v506 = vpop.f32.mrb[0].mxu0
        %v507 = vadd.f32 0.0, %v506
        %v508 = vpop.f32.mrb[0].mxu0
        %509 = vdwg.mxu0
        %v510 = vld [vmem:[%s3] sm:$0xff]
        %v511 = vld [vmem:[%s3 + $0x8] sm:$0xff]
        %v512 = vmul.f32 %v502, %v510
        %v513 = vmul.f32 %v507, %v511
        %vm514 = vcmask 523264
        %v515 = vsel %vm514, %v512, 0.0
        %v516 = vsel %vm514, %v513, 0.0
        %v517 = vadd.f32 %v515, %v516
        %v518 = vrot.slane %v517, 4
        %v519 = vadd.f32 %v517, %v518
        %v520 = vrot.slane %v519, 2
        %v521 = vadd.f32 %v519, %v520
        %v522 = vrot.slane %v521, 1
        %v523 = vadd.f32 %v521, %v522
        %v524 = vld [vmem:[%s286] sm:$0xff]
        %v525 = vld [vmem:[%s286 + $0x8] sm:$0xff]
        %527 = vrot.lane.b32.xlu0 %v523, 64
        %v528 = vpop.permute.xlu0 %527
        %v530 = vadd.f32 %v502, %v528
        %v531 = vadd.f32 %v507, %v528
        %vm532 = vcmp.ge.f32.partialorder %v530, 0.0
        %vm533 = vcmp.ge.f32.partialorder %v531, 0.0
        %v534 = vmul.f32 %v530, 0.2
        %v535 = vmul.f32 %v531, 0.2
        %v536 = vsel %vm532, %v530, %v534
        %v537 = vsel %vm533, %v531, %v535
        %vm538 = vcmp.gt.f32.partialorder %v524, 0.0
        %vm539 = vcmp.gt.f32.partialorder %v525, 0.0
        %542 = vrot.lane.b32.xlu0 %v536, 64
        %v543 = vpop.permute.xlu0 %542
        %544 = vrot.lane.b32.xlu0 %v537, 64
        %v545 = vpop.permute.xlu0 %544
        %v548 = vsel %vm538, %v543, -1e+30
        %v549 = vsel %vm539, %v545, -1e+30
        %v550 = vsel %vm514, %v548, -inf
        %551 = vmax.xlane.f32.xlu0 %v550
        %v552 = vpop.xlane.xlu0 %551
        %v553 = vsel %vm514, %v549, -inf
        %554 = vmax.xlane.f32.xlu0 %v553
        %v555 = vpop.xlane.xlu0 %554
        %v556 = vsub.f32 %v548, %v552
        %v557 = vsub.f32 %v549, %v555
        %v558 = vmul.f32 %v556, 1.442695
        %v559 = vpow.pop %v558
        %v560 = vmul.f32 %v557, 1.442695
        %v561 = vpow.pop %v560
        %v562 = vmul.f32 %v559, %v524
        %v563 = vmul.f32 %v561, %v525
        %v564 = vld [vmem:[%s5] sm:$0xff]
        %v565 = vld [vmem:[%s5 + $0x8] sm:$0xff]
        %v566 = vld [vmem:[%s5 + $0x10] sm:$0xff]
        %v567 = vld [vmem:[%s5 + $0x18] sm:$0xff]
        %v568 = vld [vmem:[%s5 + $0x20] sm:$0xff]
        %v569 = vld [vmem:[%s5 + $0x28] sm:$0xff]
        %v570 = vld [vmem:[%s5 + $0x30] sm:$0xff]
        %v571 = vld [vmem:[%s5 + $0x38] sm:$0xff]
        %v573 = vsel %vm514, %v562, 0
        %v576 = vsel %vm514, %v563, 0
        %578 = vmatprep.subr.mxu0 0.0
        %579 = vmatpush1.msra.mxu0 %v564
        %580 = vmatprep.subr.mxu0 0.0
        %581 = vmatpush1.msra.mxu0 %v565
        %582 = vmatprep.subr.mxu0 0.0
        %583 = vmatpush1.msra.mxu0 %v566
        %584 = vmatprep.subr.mxu0 0.0
        %585 = vmatpush1.msra.mxu0 %v567
        %586 = vmatprep.subr.mxu0 0.0
        %587 = vmatpush1.msra.mxu0 %v568
        %588 = vmatprep.subr.mxu0 0.0
        %589 = vmatpush1.msra.mxu0 %v569
        %590 = vmatprep.subr.mxu0 0.0
        %591 = vmatpush1.msra.mxu0 %v570
        %592 = vmatprep.subr.mxu0 0.0
        %593 = vmatpush1.msra.mxu0 %v571
        %594 = vmatprep.subr.mxu0 0.0
        %595 = vmatpush1.msra.mxu0 0.0
        %596 = vmatprep.subr.mxu0 0.0
        %597 = vmatpush1.msra.mxu0 0.0
        %598 = vmatprep.subr.mxu0 0.0
        %599 = vmatpush1.msra.mxu0 0.0
        %600 = vmatprep.subr.mxu0 0.0
        %601 = vmatpush1.msra.mxu0 0.0
        %602 = vmatprep.subr.mxu0 0.0
        %603 = vmatpush1.msra.mxu0 0.0
        %604 = vmatprep.subr.mxu0 0.0
        %605 = vmatpush1.msra.mxu0 0.0
        %606 = vmatprep.subr.mxu0 0.0
        %607 = vmatpush1.msra.mxu0 0.0
        %608 = vmatprep.subr.mxu0 0.0
        %609 = vmatpush1.msra.mxu0 0.0
        %610 = vmatprep.subr.mxu0 0.0
        %611 = vmatpush1.msra.mxu0 0.0
        %612 = vmatprep.subr.mxu0 0.0
        %613 = vmatpush1.msra.mxu0 0.0
        %614 = vmatprep.subr.mxu0 0.0
        %615 = vmatpush1.msra.mxu0 0.0
        %616 = vmatprep.subr.mxu0 0.0
        %617 = vmatpush1.msra.mxu0 0.0
        %618 = vmatprep.subr.mxu0 0.0
        %619 = vmatpush1.msra.mxu0 0.0
        %620 = vmatprep.subr.mxu0 0.0
        %621 = vmatpush1.msra.mxu0 0.0
        %622 = vmatprep.subr.mxu0 0.0
        %623 = vmatpush1.msra.mxu0 0.0
        %624 = vmatprep.subr.mxu0 0.0
        %625 = vmatpush1.msra.mxu0 0.0
        %626 = vmatprep.subr.mxu0 0.0
        %627 = vmatpush1.msra.mxu0 0.0
        %628 = vmatprep.subr.mxu0 0.0
        %629 = vmatpush1.msra.mxu0 0.0
        %630 = vmatprep.subr.mxu0 0.0
        %631 = vmatpush1.msra.mxu0 0.0
        %632 = vmatprep.subr.mxu0 0.0
        %633 = vmatpush1.msra.mxu0 0.0
        %634 = vmatprep.subr.mxu0 0.0
        %635 = vmatpush1.msra.mxu0 0.0
        %636 = vmatprep.subr.mxu0 0.0
        %637 = vmatpush1.msra.mxu0 0.0
        %638 = vmatprep.subr.mxu0 0.0
        %639 = vmatpush1.msra.mxu0 0.0
        %640 = vmatprep.subr.mxu0 0.0
        %641 = vmatpush1.msra.mxu0 0.0
        %642 = vmatprep.mubr.f32.mxu0 0.0
        %643 = vmatmul.mubr.f32.gmra.mrb[0].mxu0 %v573
        %v644 = vpop.f32.mrb[0].mxu0
        %v645 = vadd.f32 0.0, %v644
        %v646 = vpop.f32.mrb[0].mxu0
        %647 = vmatprep.mubr.f32.mxu0 0.0
        %648 = vmatmul.mubr.f32.gmra.mrb[0].mxu0 %v576
        %v649 = vpop.f32.mrb[0].mxu0
        %v650 = vadd.f32 0.0, %v649
        %v651 = vpop.f32.mrb[0].mxu0
        %652 = vdwg.mxu0
        %v653 = vmax.f32 %v645, 1e-30
        %v654 = vmax.f32 %v650, 1e-30
        %v655 = vrcp.pop %v653
        %v656 = vrcp.pop %v654
        %v657 = vmul.f32 %v653, %v655
        %v658 = vmul.f32 %v654, %v656
        %v659 = vsub.f32 2.0, %v657
        %v660 = vsub.f32 2.0, %v658
        %v661 = vmul.f32 %v655, %v659
        %v662 = vmul.f32 %v656, %v660
        %v663 = vld [vmem:[%s4] sm:$0xff]
        %v664 = vld [vmem:[%s4 + $0x8] sm:$0xff]
        %v665 = vld [vmem:[%s4 + $0x10] sm:$0xff]
        %v666 = vld [vmem:[%s4 + $0x18] sm:$0xff]
        %v667 = vld [vmem:[%s4 + $0x20] sm:$0xff]
        %v668 = vld [vmem:[%s4 + $0x28] sm:$0xff]
        %v669 = vld [vmem:[%s4 + $0x30] sm:$0xff]
        %v670 = vld [vmem:[%s4 + $0x38] sm:$0xff]
        %vm671 = vcmask 130048
        %v673 = vsel %vm671, %v663, 0
        %v676 = vsel %vm671, %v664, 0
        %v679 = vsel %vm671, %v665, 0
        %v682 = vsel %vm671, %v666, 0
        %v685 = vsel %vm671, %v667, 0
        %v688 = vsel %vm671, %v668, 0
        %v691 = vsel %vm671, %v669, 0
        %v694 = vsel %vm671, %v670, 0
        %696 = vmatprep.subr.mxu0 0.0
        %697 = vmatpush1.msra.mxu0 %v425
        %698 = vmatprep.subr.mxu0 0.0
        %699 = vmatpush1.msra.mxu0 %v431
        %700 = vmatprep.subr.mxu0 0.0
        %701 = vmatpush1.msra.mxu0 0.0
        %702 = vmatprep.subr.mxu0 0.0
        %703 = vmatpush1.msra.mxu0 0.0
        %704 = vmatprep.subr.mxu0 0.0
        %705 = vmatpush1.msra.mxu0 0.0
        %706 = vmatprep.subr.mxu0 0.0
        %707 = vmatpush1.msra.mxu0 0.0
        %708 = vmatprep.subr.mxu0 0.0
        %709 = vmatpush1.msra.mxu0 0.0
        %710 = vmatprep.subr.mxu0 0.0
        %711 = vmatpush1.msra.mxu0 0.0
        %712 = vmatprep.subr.mxu0 0.0
        %713 = vmatpush1.msra.mxu0 0.0
        %714 = vmatprep.subr.mxu0 0.0
        %715 = vmatpush1.msra.mxu0 0.0
        %716 = vmatprep.subr.mxu0 0.0
        %717 = vmatpush1.msra.mxu0 0.0
        %718 = vmatprep.subr.mxu0 0.0
        %719 = vmatpush1.msra.mxu0 0.0
        %720 = vmatprep.subr.mxu0 0.0
        %721 = vmatpush1.msra.mxu0 0.0
        %722 = vmatprep.subr.mxu0 0.0
        %723 = vmatpush1.msra.mxu0 0.0
        %724 = vmatprep.subr.mxu0 0.0
        %725 = vmatpush1.msra.mxu0 0.0
        %726 = vmatprep.subr.mxu0 0.0
        %727 = vmatpush1.msra.mxu0 0.0
        %728 = vmatprep.subr.mxu0 0.0
        %729 = vmatpush1.msra.mxu0 0.0
        %730 = vmatprep.subr.mxu0 0.0
        %731 = vmatpush1.msra.mxu0 0.0
        %732 = vmatprep.subr.mxu0 0.0
        %733 = vmatpush1.msra.mxu0 0.0
        %734 = vmatprep.subr.mxu0 0.0
        %735 = vmatpush1.msra.mxu0 0.0
        %736 = vmatprep.subr.mxu0 0.0
        %737 = vmatpush1.msra.mxu0 0.0
        %738 = vmatprep.subr.mxu0 0.0
        %739 = vmatpush1.msra.mxu0 0.0
        %740 = vmatprep.subr.mxu0 0.0
        %741 = vmatpush1.msra.mxu0 0.0
        %742 = vmatprep.subr.mxu0 0.0
        %743 = vmatpush1.msra.mxu0 0.0
        %744 = vmatprep.subr.mxu0 0.0
        %745 = vmatpush1.msra.mxu0 0.0
        %746 = vmatprep.subr.mxu0 0.0
        %747 = vmatpush1.msra.mxu0 0.0
        %748 = vmatprep.subr.mxu0 0.0
        %749 = vmatpush1.msra.mxu0 0.0
        %750 = vmatprep.subr.mxu0 0.0
        %751 = vmatpush1.msra.mxu0 0.0
        %752 = vmatprep.subr.mxu0 0.0
        %753 = vmatpush1.msra.mxu0 0.0
        %754 = vmatprep.subr.mxu0 0.0
        %755 = vmatpush1.msra.mxu0 0.0
        %756 = vmatprep.subr.mxu0 0.0
        %757 = vmatpush1.msra.mxu0 0.0
        %758 = vmatprep.subr.mxu0 0.0
        %759 = vmatpush1.msra.mxu0 0.0
        %760 = vmatprep.mubr.f32.mxu0 0.0
        %761 = vmatmul.mubr.f32.gmra.mrb[0].mxu0 %v673
        %v762 = vpop.f32.mrb[0].mxu0
        %v763 = vadd.f32 0.0, %v762
        %v764 = vpop.f32.mrb[0].mxu0
        %765 = vmatprep.mubr.f32.mxu0 0.0
        %766 = vmatmul.mubr.f32.gmra.mrb[0].mxu0 %v676
        %v767 = vpop.f32.mrb[0].mxu0
        %v768 = vadd.f32 0.0, %v767
        %v769 = vpop.f32.mrb[0].mxu0
        %770 = vmatprep.mubr.f32.mxu0 0.0
        %771 = vmatmul.mubr.f32.gmra.mrb[0].mxu0 %v679
        %v772 = vpop.f32.mrb[0].mxu0
        %v773 = vadd.f32 0.0, %v772
        %v774 = vpop.f32.mrb[0].mxu0
        %775 = vmatprep.mubr.f32.mxu0 0.0
        %776 = vmatmul.mubr.f32.gmra.mrb[0].mxu0 %v682
        %v777 = vpop.f32.mrb[0].mxu0
        %v778 = vadd.f32 0.0, %v777
        %v779 = vpop.f32.mrb[0].mxu0
        %780 = vmatprep.mubr.f32.mxu0 0.0
        %781 = vmatmul.mubr.f32.gmra.mrb[0].mxu0 %v685
        %v782 = vpop.f32.mrb[0].mxu0
        %v783 = vadd.f32 0.0, %v782
        %v784 = vpop.f32.mrb[0].mxu0
        %785 = vmatprep.mubr.f32.mxu0 0.0
        %786 = vmatmul.mubr.f32.gmra.mrb[0].mxu0 %v688
        %v787 = vpop.f32.mrb[0].mxu0
        %v788 = vadd.f32 0.0, %v787
        %v789 = vpop.f32.mrb[0].mxu0
        %790 = vmatprep.mubr.f32.mxu0 0.0
        %791 = vmatmul.mubr.f32.gmra.mrb[0].mxu0 %v691
        %v792 = vpop.f32.mrb[0].mxu0
        %v793 = vadd.f32 0.0, %v792
        %v794 = vpop.f32.mrb[0].mxu0
        %795 = vmatprep.mubr.f32.mxu0 0.0
        %796 = vmatmul.mubr.f32.gmra.mrb[0].mxu0 %v694
        %v797 = vpop.f32.mrb[0].mxu0
        %v798 = vadd.f32 0.0, %v797
        %v799 = vpop.f32.mrb[0].mxu0
        %800 = vdwg.mxu0
        %v801 = vmul.f32 %v763, %v564
        %v802 = vmul.f32 %v768, %v565
        %v803 = vmul.f32 %v773, %v566
        %v804 = vmul.f32 %v778, %v567
        %v805 = vmul.f32 %v783, %v568
        %v806 = vmul.f32 %v788, %v569
        %v807 = vmul.f32 %v793, %v570
        %v808 = vmul.f32 %v798, %v571
        %809 = vmatprep.subr.mxu0 0.0
        %810 = vmatpush1.msra.mxu0 %v801
        %811 = vmatprep.subr.mxu0 0.0
        %812 = vmatpush1.msra.mxu0 %v802
        %813 = vmatprep.subr.mxu0 0.0
        %814 = vmatpush1.msra.mxu0 %v803
        %815 = vmatprep.subr.mxu0 0.0
        %816 = vmatpush1.msra.mxu0 %v804
        %817 = vmatprep.subr.mxu0 0.0
        %818 = vmatpush1.msra.mxu0 %v805
        %819 = vmatprep.subr.mxu0 0.0
        %820 = vmatpush1.msra.mxu0 %v806
        %821 = vmatprep.subr.mxu0 0.0
        %822 = vmatpush1.msra.mxu0 %v807
        %823 = vmatprep.subr.mxu0 0.0
        %824 = vmatpush1.msra.mxu0 %v808
        %825 = vmatprep.subr.mxu0 0.0
        %826 = vmatpush1.msra.mxu0 0.0
        %827 = vmatprep.subr.mxu0 0.0
        %828 = vmatpush1.msra.mxu0 0.0
        %829 = vmatprep.subr.mxu0 0.0
        %830 = vmatpush1.msra.mxu0 0.0
        %831 = vmatprep.subr.mxu0 0.0
        %832 = vmatpush1.msra.mxu0 0.0
        %833 = vmatprep.subr.mxu0 0.0
        %834 = vmatpush1.msra.mxu0 0.0
        %835 = vmatprep.subr.mxu0 0.0
        %836 = vmatpush1.msra.mxu0 0.0
        %837 = vmatprep.subr.mxu0 0.0
        %838 = vmatpush1.msra.mxu0 0.0
        %839 = vmatprep.subr.mxu0 0.0
        %840 = vmatpush1.msra.mxu0 0.0
        %841 = vmatprep.subr.mxu0 0.0
        %842 = vmatpush1.msra.mxu0 0.0
        %843 = vmatprep.subr.mxu0 0.0
        %844 = vmatpush1.msra.mxu0 0.0
        %845 = vmatprep.subr.mxu0 0.0
        %846 = vmatpush1.msra.mxu0 0.0
        %847 = vmatprep.subr.mxu0 0.0
        %848 = vmatpush1.msra.mxu0 0.0
        %849 = vmatprep.subr.mxu0 0.0
        %850 = vmatpush1.msra.mxu0 0.0
        %851 = vmatprep.subr.mxu0 0.0
        %852 = vmatpush1.msra.mxu0 0.0
        %853 = vmatprep.subr.mxu0 0.0
        %854 = vmatpush1.msra.mxu0 0.0
        %855 = vmatprep.subr.mxu0 0.0
        %856 = vmatpush1.msra.mxu0 0.0
        %857 = vmatprep.subr.mxu0 0.0
        %858 = vmatpush1.msra.mxu0 0.0
        %859 = vmatprep.subr.mxu0 0.0
        %860 = vmatpush1.msra.mxu0 0.0
        %861 = vmatprep.subr.mxu0 0.0
        %862 = vmatpush1.msra.mxu0 0.0
        %863 = vmatprep.subr.mxu0 0.0
        %864 = vmatpush1.msra.mxu0 0.0
        %865 = vmatprep.subr.mxu0 0.0
        %866 = vmatpush1.msra.mxu0 0.0
        %867 = vmatprep.subr.mxu0 0.0
        %868 = vmatpush1.msra.mxu0 0.0
        %869 = vmatprep.subr.mxu0 0.0
        %870 = vmatpush1.msra.mxu0 0.0
        %871 = vmatprep.subr.mxu0 0.0
        %872 = vmatpush1.msra.mxu0 0.0
        %873 = vmatprep.mubr.f32.mxu0 0.0
        %874 = vmatmul.mubr.f32.gmra.mrb[0].mxu0 %v573
        %v875 = vpop.f32.mrb[0].mxu0
        %v876 = vadd.f32 0.0, %v875
        %v877 = vpop.f32.mrb[0].mxu0
        %878 = vmatprep.mubr.f32.mxu0 0.0
        %879 = vmatmul.mubr.f32.gmra.mrb[0].mxu0 %v576
        %v880 = vpop.f32.mrb[0].mxu0
        %v881 = vadd.f32 0.0, %v880
        %v882 = vpop.f32.mrb[0].mxu0
        %883 = vdwg.mxu0
        %v884 = vmul.f32 %v876, %v661
        %v885 = vmul.f32 %v881, %v662
        %v886 = vadd.f32 %v427, %v884
        %v887 = vadd.f32 %v433, %v885
        %888 = vst [vmem:[%s323] sm:$0xff] %v886
        %889 = vst [vmem:[%s323 + $0x8] sm:$0xff] %v887
        %s890 = sand.u32 %s170, 1
        %s891 = scalar_lea.sflag [#allocation4], %s890
        %s892 = sand.u32 %s170, 1
        %s893 = smul.addr %s892, 16
        %s894 = scalar_lea.vmem [#allocation8], %s893
        // Predicated region
        $region57: #{tpu_custom_call.1} parent=43 // pred_check
          %p895 = pneg %p180
        $region58: #{tpu_custom_call.1} parent=43 // pred_check_branch
          %897 = sbr.rel (%p895) target = $region60
        $region59: #{tpu_custom_call.1} parent=43 // pred_region
          %s899 = ssub.s32 256, 256
          %900 = vsyncadd %s891, %s899
          %s901 = smul.addr %s26, 2
          %s902 = smul.addr %s901, 128
          %s903 = scalar_lea.hbm %s6, %s902
          %s904 = sshll.u32 %s894, 4
          %s905 = int_to_ptr.vmem [resolvable:$true] %s904
          %910 = dma.vmem_to_hbm [thread:$0]  %s905, 256, %s903, %s891, 128, 128, 8
        $region60: #{tpu_custom_call.1} parent=43 // pred_fallthru
          _
      $region44: #{tpu_custom_call.1} parent=5 // pred_fallthru
        _
      %p911 = scmp.le.s32.totalorder 2, %s21
      // Predicated region
      $region61: #{tpu_custom_call.1} parent=5 // pred_check
        %p912 = pneg %p911
      $region62: #{tpu_custom_call.1} parent=5 // pred_check_branch
        %914 = sbr.rel (%p912) target = $region64
      $region63: #{tpu_custom_call.1} parent=5 // pred_region
        %s915 = ssub.s32 %s21, 2
        // Predicated region
        $region65: #{tpu_custom_call.1} parent=63 // pred_check
          %p916 = pneg %p186
        $region66: #{tpu_custom_call.1} parent=63 // pred_check_branch
          %918 = sbr.rel (%p916) target = $region68
        $region67: #{tpu_custom_call.1} parent=63 // pred_region
          %s919 = sand.u32 %s171, 1
          %s920 = scalar_lea.sflag [#allocation4], %s919
          %s921 = sand.u32 %s171, 1
          %s922 = smul.addr %s921, 16
          %s923 = scalar_lea.vmem [#allocation8], %s922
          %924 = dma.done %s920, 256
        $region68: #{tpu_custom_call.1} parent=63 // pred_fallthru
          _
      $region64: #{tpu_custom_call.1} parent=5 // pred_fallthru
        _
    $region6: #{tpu_custom_call.1} parent=1 // loop_footer
      %s25 = sadd.s32 1, %s21
    $region7: #{tpu_custom_call.1} parent=1 // loop_footer_branch
      %20 = sbr.rel target = $region3
    $region8: #{tpu_custom_call.1} parent=1 // loop_exit
      _
    %925 = vsyncpa [#allocation3], 1
    %s926 = scalar_lea.sflag [#allocation3], 1
    %927 = vsyncpa %s926, 1
    %928 = vsyncpa [#allocation6], 1
    %s929 = scalar_lea.sflag [#allocation6], 1
    %930 = vsyncpa %s929, 1
    %931 = vsyncpa [#allocation4], 1
    %s932 = scalar_lea.sflag [#allocation4], 1
    %933 = vsyncpa %s932, 1

</llo_original>
